<compile_context>
chip_gen: v7x
topology: tpu7x:2x2x1
jax: 0.10.0
libtpu: 0.0.40
codegen_flags: <defaults>
</compile_context>

<pallas_src>
import functools

import jax
import jax.numpy as jnp
from jax import lax
from jax.experimental import pallas as pl
from jax.experimental.pallas import tpu as pltpu


# --------------------------------------------------------------------------- #
# Fused conv1 + BN1 + ReLU + conv2 + BN2 + residual kernel (lane-dense (C, M)) #
# --------------------------------------------------------------------------- #

def _tap_masks(h_idx, w_idx, H, W):
    """Per-tap validity mask (f32 0/1), None for the centre tap (always valid)."""
    masks = []
    for ky in range(3):
        for kx in range(3):
            dy, dx = ky - 1, kx - 1
            if dy == 0 and dx == 0:
                masks.append(None)
            else:
                hv = h_idx + dy
                wv = w_idx + dx
                valid = (hv >= 0) & (hv < H) & (wv >= 0) & (wv < W)
                masks.append(valid.astype(jnp.float32))        # (1, M)
    return masks


def _conv3x3_lane_dense(y, w_packed, masks, W, M):
    """3x3 conv, stride 1, zero padding 1, on a (Cin, M) activation.

    y        : (Cin, M) f32, M = N*H*W laid out (n, h, w) row-major.
    w_packed : (Cout, 9*Cin) bf16, column index = (ky*3 + kx)*Cin + ci.
    masks    : 9 masks of shape (1, M) f32 (None for the centre tap).
    Returns (Cout, M) f32.

    Spatial taps are lane rotations (XLU slot, not VPU) of the flat M axis; the
    masks zero positions whose shifted (h, w) leaves the image, which is exactly
    the conv zero-padding.  All taps are packed into one (9*Cin, M) patch so the
    conv is a single K = 9*Cin MXU matmul with a lane-dense (Cout, M) result.
    """
    taps = []
    t = 0
    for ky in range(3):
        for kx in range(3):
            dy, dx = ky - 1, kx - 1
            off = dy * W + dx                                   # flat-index shift
            shifted = y if off == 0 else pltpu.roll(y, shift=(-off) % M, axis=1)
            taps.append(shifted if masks[t] is None else shifted * masks[t])
            t += 1
    patch = jnp.concatenate(taps, axis=0).astype(jnp.bfloat16)  # (9*Cin, M)
    return jnp.dot(w_packed, patch, preferred_element_type=jnp.float32)


def _bn_train(acc, gamma, beta, inv_m, eps):
    """Train-mode BatchNorm on (C, M): batch stats, biased var, single pass."""
    mean = jnp.sum(acc, axis=1, keepdims=True) * inv_m           # (C, 1)
    msq = jnp.sum(acc * acc, axis=1, keepdims=True) * inv_m      # E[x^2]
    inv_std = lax.rsqrt(msq - mean * mean + eps)
    return (acc - mean) * (inv_std * gamma) + beta


def fused_block_kernel(x_ref, hw_ref, w1_ref, w2_ref, bn_ref, out_ref,
                       *, H, W, eps):
    """conv1+bn1+relu+conv2+bn2+residual, all lane-dense, one pallas_call.

    x_ref  : (C, M) f32   input activation == residual (inplanes == planes)
    hw_ref : (2, M) i32   rows = [h index, w index] of each flat position
    w1_ref : (C, 9*C) bf16 packed conv1 weight
    w2_ref : (C, 9*C) bf16 packed conv2 weight
    bn_ref : (C, 4)  f32  columns = [gamma1, beta1, gamma2, beta2]
    out_ref: (C, M)  f32
    """
    M = x_ref.shape[1]
    inv_m = 1.0 / M

    x = x_ref[...]                           # f32; also the residual (no extra DMA)
    h_idx = hw_ref[0:1, :]
    w_idx = hw_ref[1:2, :]
    masks = _tap_masks(h_idx, w_idx, H, W)

    g1 = bn_ref[:, 0:1]
    b1 = bn_ref[:, 1:2]
    g2 = bn_ref[:, 2:3]
    b2 = bn_ref[:, 3:4]

    acc1 = _conv3x3_lane_dense(x, w1_ref[...], masks, W, M)
    y1 = jnp.maximum(_bn_train(acc1, g1, b1, inv_m, eps), 0.0)

    acc2 = _conv3x3_lane_dense(y1, w2_ref[...], masks, W, M)
    out_ref[...] = _bn_train(acc2, g2, b2, inv_m, eps) + x


def conv_block_lane_dense(x_nchw, params, eps=1e-5):
    """Runs the fused conv path; returns (planes, N*H*W) f32, columns (n, h, w)."""
    N, C, H, W = x_nchw.shape
    planes = params["w1"].shape[0]
    # residual add without downsample requires inplanes == planes (as in the module)
    assert planes == C and params["w2"].shape[0] == planes
    M = N * H * W

    x_cm = jnp.transpose(x_nchw.astype(jnp.float32), (1, 0, 2, 3)).reshape(C, M)
    m = jnp.arange(M, dtype=jnp.int32)
    hw_idx = jnp.stack([(m % (H * W)) // W, m % W], axis=0)       # (2, M) i32

    def pack(w):                               # OIHW -> (O, (ky*3+kx)*I + i) bf16
        o, i = w.shape[0], w.shape[1]
        return jnp.transpose(w, (0, 2, 3, 1)).reshape(o, 9 * i).astype(jnp.bfloat16)

    w1p, w2p = pack(params["w1"]), pack(params["w2"])
    bn = jnp.stack([params["g1"], params["b1"], params["g2"], params["b2"]],
                   axis=1).astype(jnp.float32)                    # (planes, 4)

    kernel = functools.partial(fused_block_kernel, H=H, W=W, eps=eps)
    return pl.pallas_call(
        kernel,
        out_shape=jax.ShapeDtypeStruct((planes, M), jnp.float32),
        grid=(1,),
        in_specs=[
            pl.BlockSpec((C, M), lambda i: (0, 0)),
            pl.BlockSpec((2, M), lambda i: (0, 0)),
            pl.BlockSpec((planes, 9 * C), lambda i: (0, 0)),
            pl.BlockSpec((planes, 9 * planes), lambda i: (0, 0)),
            pl.BlockSpec((planes, 4), lambda i: (0, 0)),
        ],
        out_specs=pl.BlockSpec((planes, M), lambda i: (0, 0)),
        compiler_params=pltpu.CompilerParams(
            dimension_semantics=("arbitrary",),
            vmem_limit_bytes=32 * 1024 * 1024),
    )(x_cm, hw_idx, w1p, w2p, bn)


# --------------------------------------------------------------------------- #
# fc_clip_input_concat + final ReLU (lane-dense, tiled over M, parallel grid)  #
# --------------------------------------------------------------------------- #

def fc_relu_kernel(x_ref, w_ref, b_ref, o_ref):
    """o = relu(W @ x + b).  x:(K, tm) f32  w:(P, K) bf16  b:(P,1)  o:(P, tm)."""
    x = x_ref[...].astype(jnp.bfloat16)
    out = jnp.dot(w_ref[...], x, preferred_element_type=jnp.float32) + b_ref[...]
    o_ref[...] = jnp.maximum(out, 0.0)


def fc_concat_relu(cat2d, fc_w, fc_b):
    """relu(Linear) on the scrambled (C_total, M) matrix -> (P, M) lane-dense.

    fc_w is used in its native PyTorch (out, in) orientation -- no transpose."""
    K, M = cat2d.shape
    P = fc_w.shape[0]
    tm = 256 if M % 256 == 0 else (128 if M % 128 == 0 else M)
    return pl.pallas_call(
        fc_relu_kernel,
        out_shape=jax.ShapeDtypeStruct((P, M), jnp.float32),
        grid=(M // tm,),
        in_specs=[
            pl.BlockSpec((K, tm), lambda i: (0, i)),
            pl.BlockSpec((P, K), lambda i: (0, 0)),
            pl.BlockSpec((P, 1), lambda i: (0, 0)),
        ],
        out_specs=pl.BlockSpec((P, tm), lambda i: (0, i)),
        compiler_params=pltpu.CompilerParams(
            dimension_semantics=("parallel",),
            vmem_limit_bytes=32 * 1024 * 1024),
    )(cat2d.astype(jnp.float32), fc_w.astype(jnp.bfloat16),
      fc_b.reshape(P, 1).astype(jnp.float32))


# ------------------------------ full forward --------------------------------- #

def basic_block_forward(x_nchw, clip_features, params, eps=1e-5):
    """BasicBlock.forward with clip_flag=True, stride=1, downsample=None."""
    N, _, H, W = x_nchw.shape
    planes = params["w1"].shape[0]
    M = N * H * W

    out_cm = conv_block_lane_dense(x_nchw, params, eps)           # (planes, M)

    # Back to NCHW for the exact torch concat / .view(C, -1).T raw-memory scramble
    # (XLA data-movement glue; inherent to the module's view semantics).
    out_nchw = jnp.transpose(out_cm.reshape(planes, N, H, W), (1, 0, 2, 3))
    clip_f = clip_features.astype(jnp.float32)
    clip_con = jnp.broadcast_to(clip_f[:, :, None, None],
                                (N, clip_f.shape[1], H, W))
    cat = jnp.concatenate([out_nchw, clip_con], axis=1)           # (N, P+clip, H, W)
    cat2d = cat.reshape(cat.shape[1], M)                          # raw view(C_total, -1)

    fc_cm = fc_concat_relu(cat2d, params["fc_w"], params["fc_b"])  # (planes, M)
    out = jnp.transpose(fc_cm).reshape(N, planes, H, W)           # torch.reshape(., orig)
    return out, clip_features


# ------------------------------ pure-JAX reference ---------------------------- #

def reference_forward(x, clip_features, p, eps=1e-5):
    def conv(y, w):
        return lax.conv_general_dilated(
            y, w, (1, 1), ((1, 1), (1, 1)),
            dimension_numbers=("NCHW", "OIHW", "NCHW"))

    def bn(y, gamma, beta):
        m = y.mean(axis=(0, 2, 3), keepdims=True)
        v = ((y - m) ** 2).mean(axis=(0, 2, 3), keepdims=True)
        return ((y - m) / jnp.sqrt(v + eps)) * gamma[None, :, None, None] \
               + beta[None, :, None, None]

    residual = x
    out = jax.nn.relu(bn(conv(x, p["w1"]), p["g1"], p["b1"]))
    out = bn(conv(out, p["w2"]), p["g2"], p["b2"])
    out = out + residual
    N, P, H, W = out.shape
    clip_con = jnp.broadcast_to(clip_features.astype(jnp.float32)[:, :, None, None],
                                (N, clip_features.shape[1], H, W))
    cat = jnp.concatenate([out, clip_con], axis=1)
    flat = cat.reshape(cat.shape[1], -1).T
    lin = jax.nn.relu(flat @ p["fc_w"].T + p["fc_b"])
    return lin.reshape(N, P, H, W)


# ----------------------------------- main ------------------------------------ #

if __name__ == "__main__":
    N, inplanes, planes, H, W = 2, 8, 8, 16, 16
    clip_addition = 16

    key = jax.random.PRNGKey(0)
    ks = jax.random.split(key, 10)
    params = {
        "w1": jax.random.normal(ks[0], (planes, inplanes, 3, 3), jnp.float32) * 0.1,
        "g1": 1.0 + 0.1 * jax.random.normal(ks[1], (planes,), jnp.float32),
        "b1": 0.1 * jax.random.normal(ks[2], (planes,), jnp.float32),
        "w2": jax.random.normal(ks[3], (planes, planes, 3, 3), jnp.float32) * 0.1,
        "g2": 1.0 + 0.1 * jax.random.normal(ks[4], (planes,), jnp.float32),
        "b2": 0.1 * jax.random.normal(ks[5], (planes,), jnp.float32),
        "fc_w": jax.random.normal(ks[6], (planes, clip_addition + planes),
                                  jnp.float32) * 0.1,
        "fc_b": 0.1 * jax.random.normal(ks[7], (planes,), jnp.float32),
    }

    x = jax.random.normal(ks[8], (N, inplanes, H, W), jnp.float32)
    clip_features = jax.random.normal(ks[9], (N, clip_addition), jnp.float32)

    out, clip_out = basic_block_forward(x, clip_features, params)
    out = jax.block_until_ready(out)

    ref = reference_forward(x, clip_features, params)
    err = float(jnp.max(jnp.abs(out - ref)))
    assert out.shape == (N, planes, H, W), out.shape
    assert clip_out.shape == clip_features.shape
    # bf16 MXU inputs with f32 accumulation / BN: same tolerance as before.
    assert err < 5e-2, f"mismatch vs reference: max abs err = {err}"

    print("KERNEL_OK")
</pallas_src>

<mosaic_0001>
module attributes {stable_mosaic.version = 11 : i64} {
  func.func @fused_block_kernel(%arg0: i32, %arg1: memref<8x512xf32, #tpu.memory_space<vmem>>, %arg2: memref<2x512xi32, #tpu.memory_space<vmem>>, %arg3: memref<8x72xbf16, #tpu.memory_space<vmem>>, %arg4: memref<8x72xbf16, #tpu.memory_space<vmem>>, %arg5: memref<8x4xf32, #tpu.memory_space<vmem>>, %arg6: memref<8x512xf32, #tpu.memory_space<vmem>>) attributes {dimension_semantics = [#tpu.dimension_semantics<arbitrary>], iteration_bounds = array<i64: 1>, scalar_prefetch = 0 : i64, scratch_operands = 0 : i64, tpu.core_type = #tpu.core_type<tc>, window_params = [{pipeline_mode = #tpu.pipeline_mode<synchronous>, transform_indices = @transform_0, window_bounds = array<i64: 8, 512>}, {pipeline_mode = #tpu.pipeline_mode<synchronous>, transform_indices = @transform_1, window_bounds = array<i64: 2, 512>}, {pipeline_mode = #tpu.pipeline_mode<synchronous>, transform_indices = @transform_2, window_bounds = array<i64: 8, 72>}, {pipeline_mode = #tpu.pipeline_mode<synchronous>, transform_indices = @transform_3, window_bounds = array<i64: 8, 72>}, {pipeline_mode = #tpu.pipeline_mode<synchronous>, transform_indices = @transform_4, window_bounds = array<i64: 8, 4>}, {pipeline_mode = #tpu.pipeline_mode<synchronous>, transform_indices = @transform_5, window_bounds = array<i64: 8, 512>}]} {
    %c0 = arith.constant 0 : index
    %c0_0 = arith.constant 0 : index
    %0 = vector.load %arg1[%c0, %c0_0] : memref<8x512xf32, #tpu.memory_space<vmem>>, vector<8x512xf32>
    %c0_1 = arith.constant 0 : index
    %c0_2 = arith.constant 0 : index
    %1 = vector.load %arg2[%c0_1, %c0_2] : memref<2x512xi32, #tpu.memory_space<vmem>>, vector<1x512xi32>
    %c1 = arith.constant 1 : index
    %c0_3 = arith.constant 0 : index
    %2 = vector.load %arg2[%c1, %c0_3] : memref<2x512xi32, #tpu.memory_space<vmem>>, vector<1x512xi32>
    %c-1_i32 = arith.constant -1 : i32
    %3 = vector.broadcast %c-1_i32 : i32 to vector<1x512xi32>
    %4 = arith.addi %1, %3 : vector<1x512xi32>
    %c-1_i32_4 = arith.constant -1 : i32
    %5 = vector.broadcast %c-1_i32_4 : i32 to vector<1x512xi32>
    %6 = arith.addi %2, %5 : vector<1x512xi32>
    %c0_i32 = arith.constant 0 : i32
    %7 = vector.broadcast %c0_i32 : i32 to vector<1x512xi32>
    %8 = arith.cmpi sge, %4, %7 : vector<1x512xi32>
    %c16_i32 = arith.constant 16 : i32
    %9 = vector.broadcast %c16_i32 : i32 to vector<1x512xi32>
    %10 = arith.cmpi slt, %4, %9 : vector<1x512xi32>
    %11 = arith.andi %8, %10 : vector<1x512xi1>
    %c0_i32_5 = arith.constant 0 : i32
    %12 = vector.broadcast %c0_i32_5 : i32 to vector<1x512xi32>
    %13 = arith.cmpi sge, %6, %12 : vector<1x512xi32>
    %14 = arith.andi %11, %13 : vector<1x512xi1>
    %c16_i32_6 = arith.constant 16 : i32
    %15 = vector.broadcast %c16_i32_6 : i32 to vector<1x512xi32>
    %16 = arith.cmpi slt, %6, %15 : vector<1x512xi32>
    %17 = arith.andi %14, %16 : vector<1x512xi1>
    %18 = arith.extui %17 : vector<1x512xi1> to vector<1x512xi32>
    %19 = arith.sitofp %18 : vector<1x512xi32> to vector<1x512xf32>
    %c-1_i32_7 = arith.constant -1 : i32
    %20 = vector.broadcast %c-1_i32_7 : i32 to vector<1x512xi32>
    %21 = arith.addi %1, %20 : vector<1x512xi32>
    %c0_i32_8 = arith.constant 0 : i32
    %22 = vector.broadcast %c0_i32_8 : i32 to vector<1x512xi32>
    %23 = arith.addi %2, %22 : vector<1x512xi32>
    %c0_i32_9 = arith.constant 0 : i32
    %24 = vector.broadcast %c0_i32_9 : i32 to vector<1x512xi32>
    %25 = arith.cmpi sge, %21, %24 : vector<1x512xi32>
    %c16_i32_10 = arith.constant 16 : i32
    %26 = vector.broadcast %c16_i32_10 : i32 to vector<1x512xi32>
    %27 = arith.cmpi slt, %21, %26 : vector<1x512xi32>
    %28 = arith.andi %25, %27 : vector<1x512xi1>
    %c0_i32_11 = arith.constant 0 : i32
    %29 = vector.broadcast %c0_i32_11 : i32 to vector<1x512xi32>
    %30 = arith.cmpi sge, %23, %29 : vector<1x512xi32>
    %31 = arith.andi %28, %30 : vector<1x512xi1>
    %c16_i32_12 = arith.constant 16 : i32
    %32 = vector.broadcast %c16_i32_12 : i32 to vector<1x512xi32>
    %33 = arith.cmpi slt, %23, %32 : vector<1x512xi32>
    %34 = arith.andi %31, %33 : vector<1x512xi1>
    %35 = arith.extui %34 : vector<1x512xi1> to vector<1x512xi32>
    %36 = arith.sitofp %35 : vector<1x512xi32> to vector<1x512xf32>
    %c-1_i32_13 = arith.constant -1 : i32
    %37 = vector.broadcast %c-1_i32_13 : i32 to vector<1x512xi32>
    %38 = arith.addi %1, %37 : vector<1x512xi32>
    %c1_i32 = arith.constant 1 : i32
    %39 = vector.broadcast %c1_i32 : i32 to vector<1x512xi32>
    %40 = arith.addi %2, %39 : vector<1x512xi32>
    %c0_i32_14 = arith.constant 0 : i32
    %41 = vector.broadcast %c0_i32_14 : i32 to vector<1x512xi32>
    %42 = arith.cmpi sge, %38, %41 : vector<1x512xi32>
    %c16_i32_15 = arith.constant 16 : i32
    %43 = vector.broadcast %c16_i32_15 : i32 to vector<1x512xi32>
    %44 = arith.cmpi slt, %38, %43 : vector<1x512xi32>
    %45 = arith.andi %42, %44 : vector<1x512xi1>
    %c0_i32_16 = arith.constant 0 : i32
    %46 = vector.broadcast %c0_i32_16 : i32 to vector<1x512xi32>
    %47 = arith.cmpi sge, %40, %46 : vector<1x512xi32>
    %48 = arith.andi %45, %47 : vector<1x512xi1>
    %c16_i32_17 = arith.constant 16 : i32
    %49 = vector.broadcast %c16_i32_17 : i32 to vector<1x512xi32>
    %50 = arith.cmpi slt, %40, %49 : vector<1x512xi32>
    %51 = arith.andi %48, %50 : vector<1x512xi1>
    %52 = arith.extui %51 : vector<1x512xi1> to vector<1x512xi32>
    %53 = arith.sitofp %52 : vector<1x512xi32> to vector<1x512xf32>
    %c0_i32_18 = arith.constant 0 : i32
    %54 = vector.broadcast %c0_i32_18 : i32 to vector<1x512xi32>
    %55 = arith.addi %1, %54 : vector<1x512xi32>
    %c-1_i32_19 = arith.constant -1 : i32
    %56 = vector.broadcast %c-1_i32_19 : i32 to vector<1x512xi32>
    %57 = arith.addi %2, %56 : vector<1x512xi32>
    %c0_i32_20 = arith.constant 0 : i32
    %58 = vector.broadcast %c0_i32_20 : i32 to vector<1x512xi32>
    %59 = arith.cmpi sge, %55, %58 : vector<1x512xi32>
    %c16_i32_21 = arith.constant 16 : i32
    %60 = vector.broadcast %c16_i32_21 : i32 to vector<1x512xi32>
    %61 = arith.cmpi slt, %55, %60 : vector<1x512xi32>
    %62 = arith.andi %59, %61 : vector<1x512xi1>
    %c0_i32_22 = arith.constant 0 : i32
    %63 = vector.broadcast %c0_i32_22 : i32 to vector<1x512xi32>
    %64 = arith.cmpi sge, %57, %63 : vector<1x512xi32>
    %65 = arith.andi %62, %64 : vector<1x512xi1>
    %c16_i32_23 = arith.constant 16 : i32
    %66 = vector.broadcast %c16_i32_23 : i32 to vector<1x512xi32>
    %67 = arith.cmpi slt, %57, %66 : vector<1x512xi32>
    %68 = arith.andi %65, %67 : vector<1x512xi1>
    %69 = arith.extui %68 : vector<1x512xi1> to vector<1x512xi32>
    %70 = arith.sitofp %69 : vector<1x512xi32> to vector<1x512xf32>
    %c0_i32_24 = arith.constant 0 : i32
    %71 = vector.broadcast %c0_i32_24 : i32 to vector<1x512xi32>
    %72 = arith.addi %1, %71 : vector<1x512xi32>
    %c1_i32_25 = arith.constant 1 : i32
    %73 = vector.broadcast %c1_i32_25 : i32 to vector<1x512xi32>
    %74 = arith.addi %2, %73 : vector<1x512xi32>
    %c0_i32_26 = arith.constant 0 : i32
    %75 = vector.broadcast %c0_i32_26 : i32 to vector<1x512xi32>
    %76 = arith.cmpi sge, %72, %75 : vector<1x512xi32>
    %c16_i32_27 = arith.constant 16 : i32
    %77 = vector.broadcast %c16_i32_27 : i32 to vector<1x512xi32>
    %78 = arith.cmpi slt, %72, %77 : vector<1x512xi32>
    %79 = arith.andi %76, %78 : vector<1x512xi1>
    %c0_i32_28 = arith.constant 0 : i32
    %80 = vector.broadcast %c0_i32_28 : i32 to vector<1x512xi32>
    %81 = arith.cmpi sge, %74, %80 : vector<1x512xi32>
    %82 = arith.andi %79, %81 : vector<1x512xi1>
    %c16_i32_29 = arith.constant 16 : i32
    %83 = vector.broadcast %c16_i32_29 : i32 to vector<1x512xi32>
    %84 = arith.cmpi slt, %74, %83 : vector<1x512xi32>
    %85 = arith.andi %82, %84 : vector<1x512xi1>
    %86 = arith.extui %85 : vector<1x512xi1> to vector<1x512xi32>
    %87 = arith.sitofp %86 : vector<1x512xi32> to vector<1x512xf32>
    %c1_i32_30 = arith.constant 1 : i32
    %88 = vector.broadcast %c1_i32_30 : i32 to vector<1x512xi32>
    %89 = arith.addi %1, %88 : vector<1x512xi32>
    %c-1_i32_31 = arith.constant -1 : i32
    %90 = vector.broadcast %c-1_i32_31 : i32 to vector<1x512xi32>
    %91 = arith.addi %2, %90 : vector<1x512xi32>
    %c0_i32_32 = arith.constant 0 : i32
    %92 = vector.broadcast %c0_i32_32 : i32 to vector<1x512xi32>
    %93 = arith.cmpi sge, %89, %92 : vector<1x512xi32>
    %c16_i32_33 = arith.constant 16 : i32
    %94 = vector.broadcast %c16_i32_33 : i32 to vector<1x512xi32>
    %95 = arith.cmpi slt, %89, %94 : vector<1x512xi32>
    %96 = arith.andi %93, %95 : vector<1x512xi1>
    %c0_i32_34 = arith.constant 0 : i32
    %97 = vector.broadcast %c0_i32_34 : i32 to vector<1x512xi32>
    %98 = arith.cmpi sge, %91, %97 : vector<1x512xi32>
    %99 = arith.andi %96, %98 : vector<1x512xi1>
    %c16_i32_35 = arith.constant 16 : i32
    %100 = vector.broadcast %c16_i32_35 : i32 to vector<1x512xi32>
    %101 = arith.cmpi slt, %91, %100 : vector<1x512xi32>
    %102 = arith.andi %99, %101 : vector<1x512xi1>
    %103 = arith.extui %102 : vector<1x512xi1> to vector<1x512xi32>
    %104 = arith.sitofp %103 : vector<1x512xi32> to vector<1x512xf32>
    %c1_i32_36 = arith.constant 1 : i32
    %105 = vector.broadcast %c1_i32_36 : i32 to vector<1x512xi32>
    %106 = arith.addi %1, %105 : vector<1x512xi32>
    %c0_i32_37 = arith.constant 0 : i32
    %107 = vector.broadcast %c0_i32_37 : i32 to vector<1x512xi32>
    %108 = arith.addi %2, %107 : vector<1x512xi32>
    %c0_i32_38 = arith.constant 0 : i32
    %109 = vector.broadcast %c0_i32_38 : i32 to vector<1x512xi32>
    %110 = arith.cmpi sge, %106, %109 : vector<1x512xi32>
    %c16_i32_39 = arith.constant 16 : i32
    %111 = vector.broadcast %c16_i32_39 : i32 to vector<1x512xi32>
    %112 = arith.cmpi slt, %106, %111 : vector<1x512xi32>
    %113 = arith.andi %110, %112 : vector<1x512xi1>
    %c0_i32_40 = arith.constant 0 : i32
    %114 = vector.broadcast %c0_i32_40 : i32 to vector<1x512xi32>
    %115 = arith.cmpi sge, %108, %114 : vector<1x512xi32>
    %116 = arith.andi %113, %115 : vector<1x512xi1>
    %c16_i32_41 = arith.constant 16 : i32
    %117 = vector.broadcast %c16_i32_41 : i32 to vector<1x512xi32>
    %118 = arith.cmpi slt, %108, %117 : vector<1x512xi32>
    %119 = arith.andi %116, %118 : vector<1x512xi1>
    %120 = arith.extui %119 : vector<1x512xi1> to vector<1x512xi32>
    %121 = arith.sitofp %120 : vector<1x512xi32> to vector<1x512xf32>
    %c1_i32_42 = arith.constant 1 : i32
    %122 = vector.broadcast %c1_i32_42 : i32 to vector<1x512xi32>
    %123 = arith.addi %1, %122 : vector<1x512xi32>
    %c1_i32_43 = arith.constant 1 : i32
    %124 = vector.broadcast %c1_i32_43 : i32 to vector<1x512xi32>
    %125 = arith.addi %2, %124 : vector<1x512xi32>
    %c0_i32_44 = arith.constant 0 : i32
    %126 = vector.broadcast %c0_i32_44 : i32 to vector<1x512xi32>
    %127 = arith.cmpi sge, %123, %126 : vector<1x512xi32>
    %c16_i32_45 = arith.constant 16 : i32
    %128 = vector.broadcast %c16_i32_45 : i32 to vector<1x512xi32>
    %129 = arith.cmpi slt, %123, %128 : vector<1x512xi32>
    %130 = arith.andi %127, %129 : vector<1x512xi1>
    %c0_i32_46 = arith.constant 0 : i32
    %131 = vector.broadcast %c0_i32_46 : i32 to vector<1x512xi32>
    %132 = arith.cmpi sge, %125, %131 : vector<1x512xi32>
    %133 = arith.andi %130, %132 : vector<1x512xi1>
    %c16_i32_47 = arith.constant 16 : i32
    %134 = vector.broadcast %c16_i32_47 : i32 to vector<1x512xi32>
    %135 = arith.cmpi slt, %125, %134 : vector<1x512xi32>
    %136 = arith.andi %133, %135 : vector<1x512xi1>
    %137 = arith.extui %136 : vector<1x512xi1> to vector<1x512xi32>
    %138 = arith.sitofp %137 : vector<1x512xi32> to vector<1x512xf32>
    %c0_48 = arith.constant 0 : index
    %c0_49 = arith.constant 0 : index
    %139 = vector.load %arg5[%c0_48, %c0_49] : memref<8x4xf32, #tpu.memory_space<vmem>>, vector<8x1xf32>
    %c0_50 = arith.constant 0 : index
    %c1_51 = arith.constant 1 : index
    %140 = vector.load %arg5[%c0_50, %c1_51] : memref<8x4xf32, #tpu.memory_space<vmem>>, vector<8x1xf32>
    %c0_52 = arith.constant 0 : index
    %c2 = arith.constant 2 : index
    %141 = vector.load %arg5[%c0_52, %c2] : memref<8x4xf32, #tpu.memory_space<vmem>>, vector<8x1xf32>
    %c0_53 = arith.constant 0 : index
    %c3 = arith.constant 3 : index
    %142 = vector.load %arg5[%c0_53, %c3] : memref<8x4xf32, #tpu.memory_space<vmem>>, vector<8x1xf32>
    %c0_54 = arith.constant 0 : index
    %c0_55 = arith.constant 0 : index
    %143 = vector.load %arg3[%c0_54, %c0_55] : memref<8x72xbf16, #tpu.memory_space<vmem>>, vector<8x72xbf16>
    %c17_i32 = arith.constant 17 : i32
    %144 = tpu.dynamic_rotate %0 by %c17_i32 dim 1 : vector<8x512xf32>, i32 -> vector<8x512xf32>
    %145 = vector.broadcast %19 : vector<1x512xf32> to vector<8x512xf32>
    %146 = arith.mulf %144, %145 : vector<8x512xf32>
    %c16_i32_56 = arith.constant 16 : i32
    %147 = tpu.dynamic_rotate %0 by %c16_i32_56 dim 1 : vector<8x512xf32>, i32 -> vector<8x512xf32>
    %148 = vector.broadcast %36 : vector<1x512xf32> to vector<8x512xf32>
    %149 = arith.mulf %147, %148 : vector<8x512xf32>
    %c15_i32 = arith.constant 15 : i32
    %150 = tpu.dynamic_rotate %0 by %c15_i32 dim 1 : vector<8x512xf32>, i32 -> vector<8x512xf32>
    %151 = vector.broadcast %53 : vector<1x512xf32> to vector<8x512xf32>
    %152 = arith.mulf %150, %151 : vector<8x512xf32>
    %c1_i32_57 = arith.constant 1 : i32
    %153 = tpu.dynamic_rotate %0 by %c1_i32_57 dim 1 : vector<8x512xf32>, i32 -> vector<8x512xf32>
    %154 = vector.broadcast %70 : vector<1x512xf32> to vector<8x512xf32>
    %155 = arith.mulf %153, %154 : vector<8x512xf32>
    %c511_i32 = arith.constant 511 : i32
    %156 = tpu.dynamic_rotate %0 by %c511_i32 dim 1 : vector<8x512xf32>, i32 -> vector<8x512xf32>
    %157 = vector.broadcast %87 : vector<1x512xf32> to vector<8x512xf32>
    %158 = arith.mulf %156, %157 : vector<8x512xf32>
    %c497_i32 = arith.constant 497 : i32
    %159 = tpu.dynamic_rotate %0 by %c497_i32 dim 1 : vector<8x512xf32>, i32 -> vector<8x512xf32>
    %160 = vector.broadcast %104 : vector<1x512xf32> to vector<8x512xf32>
    %161 = arith.mulf %159, %160 : vector<8x512xf32>
    %c496_i32 = arith.constant 496 : i32
    %162 = tpu.dynamic_rotate %0 by %c496_i32 dim 1 : vector<8x512xf32>, i32 -> vector<8x512xf32>
    %163 = vector.broadcast %121 : vector<1x512xf32> to vector<8x512xf32>
    %164 = arith.mulf %162, %163 : vector<8x512xf32>
    %c495_i32 = arith.constant 495 : i32
    %165 = tpu.dynamic_rotate %0 by %c495_i32 dim 1 : vector<8x512xf32>, i32 -> vector<8x512xf32>
    %166 = vector.broadcast %138 : vector<1x512xf32> to vector<8x512xf32>
    %167 = arith.mulf %165, %166 : vector<8x512xf32>
    %168 = tpu.concatenate %146, %149, %152, %155, %0, %158, %161, %164, %167 in 0 : vector<8x512xf32>, vector<8x512xf32>, vector<8x512xf32>, vector<8x512xf32>, vector<8x512xf32>, vector<8x512xf32>, vector<8x512xf32>, vector<8x512xf32>, vector<8x512xf32> -> vector<72x512xf32>
    %169 = arith.truncf %168 : vector<72x512xf32> to vector<72x512xbf16>
    %cst = arith.constant dense<0.000000e+00> : vector<8x512xf32>
    %170 = tpu.matmul %143, %169, %cst {dimension_numbers = #tpu.dot_dimension_numbers<[1], [0], [0], [1], [0, 0, 1, 1], [], []>} : vector<8x72xbf16>, vector<72x512xbf16>, vector<8x512xf32> -> vector<8x512xf32>
    %cst_58 = arith.constant dense<0.000000e+00> : vector<8xf32>
    %171 = vector.multi_reduction <add>, %170, %cst_58 [1] : vector<8x512xf32> to vector<8xf32>
    %172 = vector.shape_cast %171 : vector<8xf32> to vector<8x1xf32>
    %cst_59 = arith.constant 0.001953125 : f32
    %173 = vector.broadcast %cst_59 : f32 to vector<8x1xf32>
    %174 = arith.mulf %172, %173 : vector<8x1xf32>
    %175 = arith.mulf %170, %170 : vector<8x512xf32>
    %cst_60 = arith.constant dense<0.000000e+00> : vector<8xf32>
    %176 = vector.multi_reduction <add>, %175, %cst_60 [1] : vector<8x512xf32> to vector<8xf32>
    %177 = vector.shape_cast %176 : vector<8xf32> to vector<8x1xf32>
    %cst_61 = arith.constant 0.001953125 : f32
    %178 = vector.broadcast %cst_61 : f32 to vector<8x1xf32>
    %179 = arith.mulf %177, %178 : vector<8x1xf32>
    %180 = arith.mulf %174, %174 : vector<8x1xf32>
    %181 = arith.subf %179, %180 : vector<8x1xf32>
    %cst_62 = arith.constant 9.99999974E-6 : f32
    %182 = vector.broadcast %cst_62 : f32 to vector<8x1xf32>
    %183 = arith.addf %181, %182 : vector<8x1xf32>
    %184 = math.rsqrt %183 : vector<8x1xf32>
    %185 = vector.broadcast %174 : vector<8x1xf32> to vector<8x512xf32>
    %186 = arith.subf %170, %185 : vector<8x512xf32>
    %187 = arith.mulf %184, %139 : vector<8x1xf32>
    %188 = vector.broadcast %187 : vector<8x1xf32> to vector<8x512xf32>
    %189 = arith.mulf %186, %188 : vector<8x512xf32>
    %190 = vector.broadcast %140 : vector<8x1xf32> to vector<8x512xf32>
    %191 = arith.addf %189, %190 : vector<8x512xf32>
    %cst_63 = arith.constant 0.000000e+00 : f32
    %192 = vector.broadcast %cst_63 : f32 to vector<8x512xf32>
    %193 = arith.maximumf %191, %192 : vector<8x512xf32>
    %c0_64 = arith.constant 0 : index
    %c0_65 = arith.constant 0 : index
    %194 = vector.load %arg4[%c0_64, %c0_65] : memref<8x72xbf16, #tpu.memory_space<vmem>>, vector<8x72xbf16>
    %c17_i32_66 = arith.constant 17 : i32
    %195 = tpu.dynamic_rotate %193 by %c17_i32_66 dim 1 : vector<8x512xf32>, i32 -> vector<8x512xf32>
    %196 = vector.broadcast %19 : vector<1x512xf32> to vector<8x512xf32>
    %197 = arith.mulf %195, %196 : vector<8x512xf32>
    %c16_i32_67 = arith.constant 16 : i32
    %198 = tpu.dynamic_rotate %193 by %c16_i32_67 dim 1 : vector<8x512xf32>, i32 -> vector<8x512xf32>
    %199 = vector.broadcast %36 : vector<1x512xf32> to vector<8x512xf32>
    %200 = arith.mulf %198, %199 : vector<8x512xf32>
    %c15_i32_68 = arith.constant 15 : i32
    %201 = tpu.dynamic_rotate %193 by %c15_i32_68 dim 1 : vector<8x512xf32>, i32 -> vector<8x512xf32>
    %202 = vector.broadcast %53 : vector<1x512xf32> to vector<8x512xf32>
    %203 = arith.mulf %201, %202 : vector<8x512xf32>
    %c1_i32_69 = arith.constant 1 : i32
    %204 = tpu.dynamic_rotate %193 by %c1_i32_69 dim 1 : vector<8x512xf32>, i32 -> vector<8x512xf32>
    %205 = vector.broadcast %70 : vector<1x512xf32> to vector<8x512xf32>
    %206 = arith.mulf %204, %205 : vector<8x512xf32>
    %c511_i32_70 = arith.constant 511 : i32
    %207 = tpu.dynamic_rotate %193 by %c511_i32_70 dim 1 : vector<8x512xf32>, i32 -> vector<8x512xf32>
    %208 = vector.broadcast %87 : vector<1x512xf32> to vector<8x512xf32>
    %209 = arith.mulf %207, %208 : vector<8x512xf32>
    %c497_i32_71 = arith.constant 497 : i32
    %210 = tpu.dynamic_rotate %193 by %c497_i32_71 dim 1 : vector<8x512xf32>, i32 -> vector<8x512xf32>
    %211 = vector.broadcast %104 : vector<1x512xf32> to vector<8x512xf32>
    %212 = arith.mulf %210, %211 : vector<8x512xf32>
    %c496_i32_72 = arith.constant 496 : i32
    %213 = tpu.dynamic_rotate %193 by %c496_i32_72 dim 1 : vector<8x512xf32>, i32 -> vector<8x512xf32>
    %214 = vector.broadcast %121 : vector<1x512xf32> to vector<8x512xf32>
    %215 = arith.mulf %213, %214 : vector<8x512xf32>
    %c495_i32_73 = arith.constant 495 : i32
    %216 = tpu.dynamic_rotate %193 by %c495_i32_73 dim 1 : vector<8x512xf32>, i32 -> vector<8x512xf32>
    %217 = vector.broadcast %138 : vector<1x512xf32> to vector<8x512xf32>
    %218 = arith.mulf %216, %217 : vector<8x512xf32>
    %219 = tpu.concatenate %197, %200, %203, %206, %193, %209, %212, %215, %218 in 0 : vector<8x512xf32>, vector<8x512xf32>, vector<8x512xf32>, vector<8x512xf32>, vector<8x512xf32>, vector<8x512xf32>, vector<8x512xf32>, vector<8x512xf32>, vector<8x512xf32> -> vector<72x512xf32>
    %220 = arith.truncf %219 : vector<72x512xf32> to vector<72x512xbf16>
    %cst_74 = arith.constant dense<0.000000e+00> : vector<8x512xf32>
    %221 = tpu.matmul %194, %220, %cst_74 {dimension_numbers = #tpu.dot_dimension_numbers<[1], [0], [0], [1], [0, 0, 1, 1], [], []>} : vector<8x72xbf16>, vector<72x512xbf16>, vector<8x512xf32> -> vector<8x512xf32>
    %cst_75 = arith.constant dense<0.000000e+00> : vector<8xf32>
    %222 = vector.multi_reduction <add>, %221, %cst_75 [1] : vector<8x512xf32> to vector<8xf32>
    %223 = vector.shape_cast %222 : vector<8xf32> to vector<8x1xf32>
    %cst_76 = arith.constant 0.001953125 : f32
    %224 = vector.broadcast %cst_76 : f32 to vector<8x1xf32>
    %225 = arith.mulf %223, %224 : vector<8x1xf32>
    %226 = arith.mulf %221, %221 : vector<8x512xf32>
    %cst_77 = arith.constant dense<0.000000e+00> : vector<8xf32>
    %227 = vector.multi_reduction <add>, %226, %cst_77 [1] : vector<8x512xf32> to vector<8xf32>
    %228 = vector.shape_cast %227 : vector<8xf32> to vector<8x1xf32>
    %cst_78 = arith.constant 0.001953125 : f32
    %229 = vector.broadcast %cst_78 : f32 to vector<8x1xf32>
    %230 = arith.mulf %228, %229 : vector<8x1xf32>
    %231 = arith.mulf %225, %225 : vector<8x1xf32>
    %232 = arith.subf %230, %231 : vector<8x1xf32>
    %cst_79 = arith.constant 9.99999974E-6 : f32
    %233 = vector.broadcast %cst_79 : f32 to vector<8x1xf32>
    %234 = arith.addf %232, %233 : vector<8x1xf32>
    %235 = math.rsqrt %234 : vector<8x1xf32>
    %236 = vector.broadcast %225 : vector<8x1xf32> to vector<8x512xf32>
    %237 = arith.subf %221, %236 : vector<8x512xf32>
    %238 = arith.mulf %235, %141 : vector<8x1xf32>
    %239 = vector.broadcast %238 : vector<8x1xf32> to vector<8x512xf32>
    %240 = arith.mulf %237, %239 : vector<8x512xf32>
    %241 = vector.broadcast %142 : vector<8x1xf32> to vector<8x512xf32>
    %242 = arith.addf %240, %241 : vector<8x512xf32>
    %243 = arith.addf %242, %0 : vector<8x512xf32>
    %c0_80 = arith.constant 0 : index
    %c0_81 = arith.constant 0 : index
    %244 = vector.load %arg6[%c0_80, %c0_81] : memref<8x512xf32, #tpu.memory_space<vmem>>, vector<8x512xf32>
    tpu.vector_store %arg6[%c0_80, %c0_81], %243 {strides = array<i32>} : memref<8x512xf32, #tpu.memory_space<vmem>>, vector<8x512xf32>,
    return
  }
  func.func @transform_0(%arg0: i32) -> (i32, i32) {
    %c0_i32 = arith.constant 0 : i32
    %c0_i32_0 = arith.constant 0 : i32
    %c0_i32_1 = arith.constant 0 : i32
    return %c0_i32, %c0_i32_0 : i32, i32
  }
  func.func @transform_1(%arg0: i32) -> (i32, i32) {
    %c0_i32 = arith.constant 0 : i32
    %c0_i32_0 = arith.constant 0 : i32
    %c0_i32_1 = arith.constant 0 : i32
    return %c0_i32, %c0_i32_0 : i32, i32
  }
  func.func @transform_2(%arg0: i32) -> (i32, i32) {
    %c0_i32 = arith.constant 0 : i32
    %c0_i32_0 = arith.constant 0 : i32
    %c0_i32_1 = arith.constant 0 : i32
    return %c0_i32, %c0_i32_0 : i32, i32
  }
  func.func @transform_3(%arg0: i32) -> (i32, i32) {
    %c0_i32 = arith.constant 0 : i32
    %c0_i32_0 = arith.constant 0 : i32
    %c0_i32_1 = arith.constant 0 : i32
    return %c0_i32, %c0_i32_0 : i32, i32
  }
  func.func @transform_4(%arg0: i32) -> (i32, i32) {
    %c0_i32 = arith.constant 0 : i32
    %c0_i32_0 = arith.constant 0 : i32
    %c0_i32_1 = arith.constant 0 : i32
    return %c0_i32, %c0_i32_0 : i32, i32
  }
  func.func @transform_5(%arg0: i32) -> (i32, i32) {
    %c0_i32 = arith.constant 0 : i32
    %c0_i32_0 = arith.constant 0 : i32
    %c0_i32_1 = arith.constant 0 : i32
    return %c0_i32, %c0_i32_0 : i32, i32
  }
}

</mosaic_0001>

<llo_original>
// kernel: tpu_custom_call.1
$region0: #{tpu_custom_call.1}
  #allocation0 [shape = 'u32[]', space=smem, size = 0x4, offset = 0x4, fixed_abs, tag = 'smem constant byte address 0x4 - core index']
  #allocation1 [shape = 'u32[144,128]{1,0:T(1,128)}', space=vmem, size = 0x12000, scoped, tag = 'internal scratch']
  %s0 = inlined_call_operand.hbm [shape: f32[8,512], index: 0, kind: input, shape index: {}]
  %s1 = inlined_call_operand.vmem [shape: s32[2,512], index: 1, kind: input, shape index: {}]
  %s2 = inlined_call_operand.vmem [shape: bf16[8,72], index: 2, kind: input, shape index: {}]
  %s3 = inlined_call_operand.vmem [shape: bf16[8,72], index: 3, kind: input, shape index: {}]
  %s4 = inlined_call_operand.vmem [shape: f32[8,4], index: 4, kind: input, shape index: {}]
  %s5 = inlined_call_operand.hbm [shape: f32[8,512], index: 5, kind: output, shape index: {}]
  %s6 = sld [smem:[#allocation0]]
  $region34: #{tpu_custom_call.1} parent=0
    _
  %s8 = ssub.s32 1, %s6
  %s9 = scalar_select 0, %s8, %s6
  $region1: #{tpu_custom_call.1} parent=0
    #allocation2 [shape = 'u8[16384]{0}', space=vmem, size = 0x4000, scoped, tag = 'input window, operand 0, single buffered']
    #allocation3 [shape = 's32[1]{0}', space=sflag, size = 0x4, scoped, tag = 'scoped memory for tpu_custom_call.1']
    #allocation4 [shape = 's32[1]{0}', space=sflag, size = 0x4, scoped, tag = 'scoped memory for tpu_custom_call.1']
    #allocation5 [shape = 'u8[16384]{0}', space=vmem, size = 0x4000, scoped, tag = 'output window, operand 0, single buffered']
    %10 = vsyncpa [#allocation3], 0
    %11 = vsyncpa [#allocation4], 0
    // Predicated region
    $region2: #{tpu_custom_call.1} parent=1 // pred_check
      _
    $region3: #{tpu_custom_call.1} parent=1 // pred_check_branch
      %13 = sbr.rel (0) target = $region5
    $region4: #{tpu_custom_call.1} parent=1 // pred_region
      %s15 = ssub.s32 512, 512
      %16 = vsyncadd [#allocation3], %s15
      %s18 = sshll.u32 [#allocation2], 4
      %s19 = int_to_ptr.vmem [resolvable:$true] %s18
      %21 = dma.hbm_to_vmem [thread:$0]  %s0, 512, %s19, [#allocation3]
    $region5: #{tpu_custom_call.1} parent=1 // pred_fallthru
      _
    // Predicated region
    $region6: #{tpu_custom_call.1} parent=1 // pred_check
      _
    $region7: #{tpu_custom_call.1} parent=1 // pred_check_branch
      %23 = sbr.rel (0) target = $region9
    $region8: #{tpu_custom_call.1} parent=1 // pred_region
      _
    $region9: #{tpu_custom_call.1} parent=1 // pred_fallthru
      _
    // Predicated region
    $region10: #{tpu_custom_call.1} parent=1 // pred_check
      _
    $region11: #{tpu_custom_call.1} parent=1 // pred_check_branch
      %25 = sbr.rel (0) target = $region13
    $region12: #{tpu_custom_call.1} parent=1 // pred_region
      _
    $region13: #{tpu_custom_call.1} parent=1 // pred_fallthru
      _
    // Predicated region
    $region14: #{tpu_custom_call.1} parent=1 // pred_check
      _
    $region15: #{tpu_custom_call.1} parent=1 // pred_check_branch
      %27 = sbr.rel (0) target = $region17
    $region16: #{tpu_custom_call.1} parent=1 // pred_region
      _
    $region17: #{tpu_custom_call.1} parent=1 // pred_fallthru
      _
    // Predicated region
    $region18: #{tpu_custom_call.1} parent=1 // pred_check
      _
    $region19: #{tpu_custom_call.1} parent=1 // pred_check_branch
      %29 = sbr.rel (0) target = $region21
    $region20: #{tpu_custom_call.1} parent=1 // pred_region
      _
    $region21: #{tpu_custom_call.1} parent=1 // pred_fallthru
      _
    // Predicated region
    $region22: #{tpu_custom_call.1} parent=1 // pred_check
      _
    $region23: #{tpu_custom_call.1} parent=1 // pred_check_branch
      %31 = sbr.rel (0) target = $region25
    $region24: #{tpu_custom_call.1} parent=1 // pred_region
      %32 = dma.done [#allocation3], 512
    $region25: #{tpu_custom_call.1} parent=1 // pred_fallthru
      _
    %v34 = vld [vmem:[#allocation2] sm:$0xff]
    %v35 = vld [vmem:[#allocation2 + $0x8] sm:$0xff]
    %v36 = vld [vmem:[#allocation2 + $0x10] sm:$0xff]
    %v37 = vld [vmem:[#allocation2 + $0x18] sm:$0xff]
    %v38 = vld [vmem:[%s1] ss:$2 sm:$0xf]
    %s39 = scalar_lea.vmem %s1, 1
    %v40 = vld [vmem:[%s39] ss:$2 sm:$0xf]
    %v41 = vadd.s32 %v38, 4294967295
    %v42 = vadd.s32 %v40, 4294967295
    %vm43 = vcmp.ge.s32.totalorder %v41, 0
    %vm44 = vcmp.lt.s32.totalorder %v41, 16
    %vm45 = vmand %vm43, %vm44
    %vm46 = vcmp.ge.s32.totalorder %v42, 0
    %vm47 = vmand %vm45, %vm46
    %vm48 = vcmp.lt.s32.totalorder %v42, 16
    %vm49 = vmand %vm47, %vm48
    %v50 = vsel %vm49, 1, 0
    %v51 = vcvt.s32.f32 %v50
    %vm52 = vcmp.ge.s32.totalorder %v40, 0
    %vm53 = vmand %vm45, %vm52
    %vm54 = vcmp.lt.s32.totalorder %v40, 16
    %vm55 = vmand %vm53, %vm54
    %v56 = vsel %vm55, 1, 0
    %v57 = vcvt.s32.f32 %v56
    %v58 = vadd.s32 %v40, 1
    %vm59 = vcmp.ge.s32.totalorder %v58, 0
    %vm60 = vmand %vm45, %vm59
    %vm61 = vcmp.lt.s32.totalorder %v58, 16
    %vm62 = vmand %vm60, %vm61
    %v63 = vsel %vm62, 1, 0
    %v64 = vcvt.s32.f32 %v63
    %vm65 = vcmp.ge.s32.totalorder %v38, 0
    %vm66 = vcmp.lt.s32.totalorder %v38, 16
    %vm67 = vmand %vm65, %vm66
    %vm68 = vmand %vm67, %vm46
    %vm69 = vmand %vm68, %vm48
    %v70 = vsel %vm69, 1, 0
    %v71 = vcvt.s32.f32 %v70
    %vm72 = vmand %vm67, %vm59
    %vm73 = vmand %vm72, %vm61
    %v74 = vsel %vm73, 1, 0
    %v75 = vcvt.s32.f32 %v74
    %v76 = vadd.s32 %v38, 1
    %vm77 = vcmp.ge.s32.totalorder %v76, 0
    %vm78 = vcmp.lt.s32.totalorder %v76, 16
    %vm79 = vmand %vm77, %vm78
    %vm80 = vmand %vm79, %vm46
    %vm81 = vmand %vm80, %vm48
    %v82 = vsel %vm81, 1, 0
    %v83 = vcvt.s32.f32 %v82
    %vm84 = vmand %vm79, %vm52
    %vm85 = vmand %vm84, %vm54
    %v86 = vsel %vm85, 1, 0
    %v87 = vcvt.s32.f32 %v86
    %vm88 = vmand %vm79, %vm59
    %vm89 = vmand %vm88, %vm61
    %v90 = vsel %vm89, 1, 0
    %v91 = vcvt.s32.f32 %v90
    %v92 = vld [vmem:[%s4] sm:$0xff]
    %v93 = vld [vmem:[%s2] sm:$0xf]
    %94 = vrot.lane.b32.xlu0 %v34, 17
    %v95 = vpop.permute.xlu0 %94
    %96 = vrot.lane.b32.xlu0 %v35, 17
    %v97 = vpop.permute.xlu0 %96
    %98 = vrot.lane.b32.xlu0 %v36, 17
    %v99 = vpop.permute.xlu0 %98
    %100 = vrot.lane.b32.xlu0 %v37, 17
    %v101 = vpop.permute.xlu0 %100
    %v102 = vlaneseq
    %v103 = vand.u32 %v102, 127
    %vm104 = vcmp.lt.s32.totalorder %v103, 17
    %v105 = vsel %vm104, %v99, %v101
    %v106 = vsel %vm104, %v97, %v99
    %v107 = vsel %vm104, %v95, %v97
    %v108 = vsel %vm104, %v101, %v95
    %v110 = vlaneseq
    %v111 = vshrl.u32 %v110, 7
    %v112 = vsub.s32 0, %v111
    %v113 = vrot.slane %v51, %v112
    %v114 = vlaneseq
    %v115 = vshrl.u32 %v114, 7
    %v116 = vsub.s32 1, %v115
    %v117 = vrot.slane %v51, %v116
    %v118 = vlaneseq
    %v119 = vshrl.u32 %v118, 7
    %v120 = vsub.s32 2, %v119
    %v121 = vrot.slane %v51, %v120
    %v122 = vlaneseq
    %v123 = vshrl.u32 %v122, 7
    %v124 = vsub.s32 3, %v123
    %v125 = vrot.slane %v51, %v124
    %v130 = vmul.f32 %v108, %v113
    %v131 = vmul.f32 %v107, %v117
    %v132 = vmul.f32 %v106, %v121
    %v133 = vmul.f32 %v105, %v125
    %134 = vrot.lane.b32.xlu0 %v34, 16
    %v135 = vpop.permute.xlu0 %134
    %136 = vrot.lane.b32.xlu0 %v35, 16
    %v137 = vpop.permute.xlu0 %136
    %138 = vrot.lane.b32.xlu0 %v36, 16
    %v139 = vpop.permute.xlu0 %138
    %140 = vrot.lane.b32.xlu0 %v37, 16
    %v141 = vpop.permute.xlu0 %140
    %vm142 = vcmp.lt.s32.totalorder %v103, 16
    %v143 = vsel %vm142, %v139, %v141
    %v144 = vsel %vm142, %v137, %v139
    %v145 = vsel %vm142, %v135, %v137
    %v146 = vsel %vm142, %v141, %v135
    %v148 = vlaneseq
    %v149 = vshrl.u32 %v148, 7
    %v150 = vsub.s32 0, %v149
    %v151 = vrot.slane %v57, %v150
    %v152 = vlaneseq
    %v153 = vshrl.u32 %v152, 7
    %v154 = vsub.s32 1, %v153
    %v155 = vrot.slane %v57, %v154
    %v156 = vlaneseq
    %v157 = vshrl.u32 %v156, 7
    %v158 = vsub.s32 2, %v157
    %v159 = vrot.slane %v57, %v158
    %v160 = vlaneseq
    %v161 = vshrl.u32 %v160, 7
    %v162 = vsub.s32 3, %v161
    %v163 = vrot.slane %v57, %v162
    %v168 = vmul.f32 %v146, %v151
    %v169 = vmul.f32 %v145, %v155
    %v170 = vmul.f32 %v144, %v159
    %v171 = vmul.f32 %v143, %v163
    %172 = vrot.lane.b32.xlu0 %v34, 15
    %v173 = vpop.permute.xlu0 %172
    %174 = vrot.lane.b32.xlu0 %v35, 15
    %v175 = vpop.permute.xlu0 %174
    %176 = vrot.lane.b32.xlu0 %v36, 15
    %v177 = vpop.permute.xlu0 %176
    %178 = vrot.lane.b32.xlu0 %v37, 15
    %v179 = vpop.permute.xlu0 %178
    %vm180 = vcmp.lt.s32.totalorder %v103, 15
    %v181 = vsel %vm180, %v177, %v179
    %v182 = vsel %vm180, %v175, %v177
    %v183 = vsel %vm180, %v173, %v175
    %v184 = vsel %vm180, %v179, %v173
    %v186 = vlaneseq
    %v187 = vshrl.u32 %v186, 7
    %v188 = vsub.s32 0, %v187
    %v189 = vrot.slane %v64, %v188
    %v190 = vlaneseq
    %v191 = vshrl.u32 %v190, 7
    %v192 = vsub.s32 1, %v191
    %v193 = vrot.slane %v64, %v192
    %v194 = vlaneseq
    %v195 = vshrl.u32 %v194, 7
    %v196 = vsub.s32 2, %v195
    %v197 = vrot.slane %v64, %v196
    %v198 = vlaneseq
    %v199 = vshrl.u32 %v198, 7
    %v200 = vsub.s32 3, %v199
    %v201 = vrot.slane %v64, %v200
    %v206 = vmul.f32 %v184, %v189
    %v207 = vmul.f32 %v183, %v193
    %v208 = vmul.f32 %v182, %v197
    %v209 = vmul.f32 %v181, %v201
    %210 = vrot.lane.b32.xlu0 %v34, 1
    %v211 = vpop.permute.xlu0 %210
    %212 = vrot.lane.b32.xlu0 %v35, 1
    %v213 = vpop.permute.xlu0 %212
    %214 = vrot.lane.b32.xlu0 %v36, 1
    %v215 = vpop.permute.xlu0 %214
    %216 = vrot.lane.b32.xlu0 %v37, 1
    %v217 = vpop.permute.xlu0 %216
    %vm218 = vcmp.lt.s32.totalorder %v103, 1
    %v219 = vsel %vm218, %v215, %v217
    %v220 = vsel %vm218, %v213, %v215
    %v221 = vsel %vm218, %v211, %v213
    %v222 = vsel %vm218, %v217, %v211
    %v224 = vlaneseq
    %v225 = vshrl.u32 %v224, 7
    %v226 = vsub.s32 0, %v225
    %v227 = vrot.slane %v71, %v226
    %v228 = vlaneseq
    %v229 = vshrl.u32 %v228, 7
    %v230 = vsub.s32 1, %v229
    %v231 = vrot.slane %v71, %v230
    %v232 = vlaneseq
    %v233 = vshrl.u32 %v232, 7
    %v234 = vsub.s32 2, %v233
    %v235 = vrot.slane %v71, %v234
    %v236 = vlaneseq
    %v237 = vshrl.u32 %v236, 7
    %v238 = vsub.s32 3, %v237
    %v239 = vrot.slane %v71, %v238
    %v244 = vmul.f32 %v222, %v227
    %v245 = vmul.f32 %v221, %v231
    %v246 = vmul.f32 %v220, %v235
    %v247 = vmul.f32 %v219, %v239
    %248 = vrot.lane.b32.xlu0 %v34, 127
    %v249 = vpop.permute.xlu0 %248
    %250 = vrot.lane.b32.xlu0 %v35, 127
    %v251 = vpop.permute.xlu0 %250
    %252 = vrot.lane.b32.xlu0 %v36, 127
    %v253 = vpop.permute.xlu0 %252
    %254 = vrot.lane.b32.xlu0 %v37, 127
    %v255 = vpop.permute.xlu0 %254
    %vm256 = vcmp.lt.s32.totalorder %v103, 127
    %v257 = vsel %vm256, %v253, %v255
    %v258 = vsel %vm256, %v251, %v253
    %v259 = vsel %vm256, %v249, %v251
    %v260 = vsel %vm256, %v255, %v249
    %v262 = vlaneseq
    %v263 = vshrl.u32 %v262, 7
    %v264 = vsub.s32 0, %v263
    %v265 = vrot.slane %v75, %v264
    %v266 = vlaneseq
    %v267 = vshrl.u32 %v266, 7
    %v268 = vsub.s32 1, %v267
    %v269 = vrot.slane %v75, %v268
    %v270 = vlaneseq
    %v271 = vshrl.u32 %v270, 7
    %v272 = vsub.s32 2, %v271
    %v273 = vrot.slane %v75, %v272
    %v274 = vlaneseq
    %v275 = vshrl.u32 %v274, 7
    %v276 = vsub.s32 3, %v275
    %v277 = vrot.slane %v75, %v276
    %v282 = vmul.f32 %v259, %v265
    %v283 = vmul.f32 %v258, %v269
    %v284 = vmul.f32 %v257, %v273
    %v285 = vmul.f32 %v260, %v277
    %286 = vrot.lane.b32.xlu0 %v34, 113
    %v287 = vpop.permute.xlu0 %286
    %288 = vrot.lane.b32.xlu0 %v35, 113
    %v289 = vpop.permute.xlu0 %288
    %290 = vrot.lane.b32.xlu0 %v36, 113
    %v291 = vpop.permute.xlu0 %290
    %292 = vrot.lane.b32.xlu0 %v37, 113
    %v293 = vpop.permute.xlu0 %292
    %vm294 = vcmp.lt.s32.totalorder %v103, 113
    %v295 = vsel %vm294, %v291, %v293
    %v296 = vsel %vm294, %v289, %v291
    %v297 = vsel %vm294, %v287, %v289
    %v298 = vsel %vm294, %v293, %v287
    %v300 = vlaneseq
    %v301 = vshrl.u32 %v300, 7
    %v302 = vsub.s32 0, %v301
    %v303 = vrot.slane %v83, %v302
    %v304 = vlaneseq
    %v305 = vshrl.u32 %v304, 7
    %v306 = vsub.s32 1, %v305
    %v307 = vrot.slane %v83, %v306
    %v308 = vlaneseq
    %v309 = vshrl.u32 %v308, 7
    %v310 = vsub.s32 2, %v309
    %v311 = vrot.slane %v83, %v310
    %v312 = vlaneseq
    %v313 = vshrl.u32 %v312, 7
    %v314 = vsub.s32 3, %v313
    %v315 = vrot.slane %v83, %v314
    %v320 = vmul.f32 %v297, %v303
    %v321 = vmul.f32 %v296, %v307
    %v322 = vmul.f32 %v295, %v311
    %v323 = vmul.f32 %v298, %v315
    %324 = vrot.lane.b32.xlu0 %v34, 112
    %v325 = vpop.permute.xlu0 %324
    %326 = vrot.lane.b32.xlu0 %v35, 112
    %v327 = vpop.permute.xlu0 %326
    %328 = vrot.lane.b32.xlu0 %v36, 112
    %v329 = vpop.permute.xlu0 %328
    %330 = vrot.lane.b32.xlu0 %v37, 112
    %v331 = vpop.permute.xlu0 %330
    %vm332 = vcmp.lt.s32.totalorder %v103, 112
    %v333 = vsel %vm332, %v329, %v331
    %v334 = vsel %vm332, %v327, %v329
    %v335 = vsel %vm332, %v325, %v327
    %v336 = vsel %vm332, %v331, %v325
    %v338 = vlaneseq
    %v339 = vshrl.u32 %v338, 7
    %v340 = vsub.s32 0, %v339
    %v341 = vrot.slane %v87, %v340
    %v342 = vlaneseq
    %v343 = vshrl.u32 %v342, 7
    %v344 = vsub.s32 1, %v343
    %v345 = vrot.slane %v87, %v344
    %v346 = vlaneseq
    %v347 = vshrl.u32 %v346, 7
    %v348 = vsub.s32 2, %v347
    %v349 = vrot.slane %v87, %v348
    %v350 = vlaneseq
    %v351 = vshrl.u32 %v350, 7
    %v352 = vsub.s32 3, %v351
    %v353 = vrot.slane %v87, %v352
    %v358 = vmul.f32 %v335, %v341
    %v359 = vmul.f32 %v334, %v345
    %v360 = vmul.f32 %v333, %v349
    %v361 = vmul.f32 %v336, %v353
    %362 = vrot.lane.b32.xlu0 %v34, 111
    %v363 = vpop.permute.xlu0 %362
    %364 = vrot.lane.b32.xlu0 %v35, 111
    %v365 = vpop.permute.xlu0 %364
    %366 = vrot.lane.b32.xlu0 %v36, 111
    %v367 = vpop.permute.xlu0 %366
    %368 = vrot.lane.b32.xlu0 %v37, 111
    %v369 = vpop.permute.xlu0 %368
    %vm370 = vcmp.lt.s32.totalorder %v103, 111
    %v371 = vsel %vm370, %v367, %v369
    %v372 = vsel %vm370, %v365, %v367
    %v373 = vsel %vm370, %v363, %v365
    %v374 = vsel %vm370, %v369, %v363
    %v376 = vlaneseq
    %v377 = vshrl.u32 %v376, 7
    %v378 = vsub.s32 0, %v377
    %v379 = vrot.slane %v91, %v378
    %v380 = vlaneseq
    %v381 = vshrl.u32 %v380, 7
    %v382 = vsub.s32 1, %v381
    %v383 = vrot.slane %v91, %v382
    %v384 = vlaneseq
    %v385 = vshrl.u32 %v384, 7
    %v386 = vsub.s32 2, %v385
    %v387 = vrot.slane %v91, %v386
    %v388 = vlaneseq
    %v389 = vshrl.u32 %v388, 7
    %v390 = vsub.s32 3, %v389
    %v391 = vrot.slane %v91, %v390
    %v396 = vmul.f32 %v373, %v379
    %v397 = vmul.f32 %v372, %v383
    %v398 = vmul.f32 %v371, %v387
    %v399 = vmul.f32 %v374, %v391
    %v400 = vpack.c.bf16 %v168, %v130
    %v401 = vpack.c.bf16 %v169, %v131
    %v402 = vpack.c.bf16 %v170, %v132
    %v403 = vpack.c.bf16 %v171, %v133
    %v404 = vpack.c.bf16 %v244, %v206
    %v405 = vpack.c.bf16 %v245, %v207
    %v406 = vpack.c.bf16 %v246, %v208
    %v407 = vpack.c.bf16 %v247, %v209
    %v408 = vpack.c.bf16 %v282, %v34
    %v409 = vpack.c.bf16 %v283, %v35
    %v410 = vpack.c.bf16 %v284, %v36
    %v411 = vpack.c.bf16 %v285, %v37
    %v412 = vpack.c.bf16 %v358, %v320
    %v413 = vpack.c.bf16 %v359, %v321
    %v414 = vpack.c.bf16 %v360, %v322
    %v415 = vpack.c.bf16 %v361, %v323
    %v416 = vpack.c.bf16 %v396, %v396
    %v417 = vpack.c.bf16 %v397, %v397
    %v418 = vpack.c.bf16 %v398, %v398
    %v419 = vpack.c.bf16 %v399, %v399
    %vm420 = vcmask 588800
    %v422 = vsel %vm420, %v93, 0
    %vm424 = vcmask 1043456
    %v426 = vsel %vm424, %v416, 0
    %v429 = vsel %vm424, %v417, 0
    %v432 = vsel %vm424, %v418, 0
    %v435 = vsel %vm424, %v419, 0
    %437 = vmatprep.subr.bf16.mxu0 %v401
    %438 = vmatpush1.bf16.msra.mxu0 %v400
    %439 = vmatprep.subr.bf16.mxu0 %v405
    %440 = vmatpush1.bf16.msra.mxu0 %v404
    %441 = vmatprep.subr.bf16.mxu0 %v409
    %442 = vmatpush1.bf16.msra.mxu0 %v408
    %443 = vmatprep.subr.bf16.mxu0 %v413
    %444 = vmatpush1.bf16.msra.mxu0 %v412
    %445 = vmatprep.subr.bf16.mxu0 %v429
    %446 = vmatpush1.bf16.msra.mxu0 %v426
    %447 = vmatprep.subr.bf16.mxu0 0
    %448 = vmatpush1.bf16.msra.mxu0 0
    %449 = vmatprep.subr.bf16.mxu0 0
    %450 = vmatpush1.bf16.msra.mxu0 0
    %451 = vmatprep.subr.bf16.mxu0 0
    %452 = vmatpush1.bf16.msra.mxu0 0
    %453 = vmatprep.subr.bf16.mxu0 0
    %454 = vmatpush1.bf16.msra.mxu0 0
    %455 = vmatprep.subr.bf16.mxu0 0
    %456 = vmatpush1.bf16.msra.mxu0 0
    %457 = vmatprep.subr.bf16.mxu0 0
    %458 = vmatpush1.bf16.msra.mxu0 0
    %459 = vmatprep.subr.bf16.mxu0 0
    %460 = vmatpush1.bf16.msra.mxu0 0
    %461 = vmatprep.subr.bf16.mxu0 0
    %462 = vmatpush1.bf16.msra.mxu0 0
    %463 = vmatprep.subr.bf16.mxu0 0
    %464 = vmatpush1.bf16.msra.mxu0 0
    %465 = vmatprep.subr.bf16.mxu0 0
    %466 = vmatpush1.bf16.msra.mxu0 0
    %467 = vmatprep.subr.bf16.mxu0 0
    %468 = vmatpush1.bf16.msra.mxu0 0
    %469 = vmatprep.mubr.bf16.mxu0 0
    %470 = vmatmul.mubr.bf16.gmra.mrb[0].mxu0 %v422
    %v471 = vpop.f32.mrb[0].mxu0
    %v472 = vadd.f32 0.0, %v471
    %v473 = vpop.f32.mrb[0].mxu0
    %v474 = vadd.f32 0.0, %v473
    %v475 = vpop.f32.mrb[0].mxu0
    %v476 = vpop.f32.mrb[0].mxu0
    %477 = vdwg.mxu0
    %478 = vmatprep.subr.bf16.mxu0 %v403
    %479 = vmatpush1.bf16.msra.mxu0 %v402
    %480 = vmatprep.subr.bf16.mxu0 %v407
    %481 = vmatpush1.bf16.msra.mxu0 %v406
    %482 = vmatprep.subr.bf16.mxu0 %v411
    %483 = vmatpush1.bf16.msra.mxu0 %v410
    %484 = vmatprep.subr.bf16.mxu0 %v415
    %485 = vmatpush1.bf16.msra.mxu0 %v414
    %486 = vmatprep.subr.bf16.mxu0 %v435
    %487 = vmatpush1.bf16.msra.mxu0 %v432
    %488 = vmatprep.subr.bf16.mxu0 0
    %489 = vmatpush1.bf16.msra.mxu0 0
    %490 = vmatprep.subr.bf16.mxu0 0
    %491 = vmatpush1.bf16.msra.mxu0 0
    %492 = vmatprep.subr.bf16.mxu0 0
    %493 = vmatpush1.bf16.msra.mxu0 0
    %494 = vmatprep.subr.bf16.mxu0 0
    %495 = vmatpush1.bf16.msra.mxu0 0
    %496 = vmatprep.subr.bf16.mxu0 0
    %497 = vmatpush1.bf16.msra.mxu0 0
    %498 = vmatprep.subr.bf16.mxu0 0
    %499 = vmatpush1.bf16.msra.mxu0 0
    %500 = vmatprep.subr.bf16.mxu0 0
    %501 = vmatpush1.bf16.msra.mxu0 0
    %502 = vmatprep.subr.bf16.mxu0 0
    %503 = vmatpush1.bf16.msra.mxu0 0
    %504 = vmatprep.subr.bf16.mxu0 0
    %505 = vmatpush1.bf16.msra.mxu0 0
    %506 = vmatprep.subr.bf16.mxu0 0
    %507 = vmatpush1.bf16.msra.mxu0 0
    %508 = vmatprep.subr.bf16.mxu0 0
    %509 = vmatpush1.bf16.msra.mxu0 0
    %510 = vmatprep.mubr.bf16.mxu0 0
    %511 = vmatmul.mubr.bf16.gmra.mrb[0].mxu0 %v422
    %v512 = vpop.f32.mrb[0].mxu0
    %v513 = vadd.f32 0.0, %v512
    %v514 = vpop.f32.mrb[0].mxu0
    %v515 = vadd.f32 0.0, %v514
    %v516 = vpop.f32.mrb[0].mxu0
    %v517 = vpop.f32.mrb[0].mxu0
    %518 = vdwg.mxu0
    %v519 = vadd.f32 %v472, %v474
    %v520 = vadd.f32 %v519, %v513
    %v521 = vadd.f32 %v520, %v515
    %522 = vadd.xlane.f32.xlu0 %v521
    %v523 = vpop.xlane.xlu0 %522
    %v524 = vmul.f32 %v523, 0.001953125
    %v525 = vmul.f32 %v472, %v472
    %v526 = vmul.f32 %v474, %v474
    %v527 = vmul.f32 %v513, %v513
    %v528 = vmul.f32 %v515, %v515
    %v529 = vadd.f32 %v525, %v526
    %v530 = vadd.f32 %v529, %v527
    %v531 = vadd.f32 %v530, %v528
    %532 = vadd.xlane.f32.xlu0 %v531
    %v533 = vpop.xlane.xlu0 %532
    %v534 = vmul.f32 %v533, 0.001953125
    %v535 = vmul.f32 %v524, %v524
    %v536 = vsub.f32 %v534, %v535
    %v537 = vadd.f32 %v536, 1e-05
    %v538 = vrsqrt.pop %v537
    %v539 = vsub.f32 %v472, %v524
    %v540 = vsub.f32 %v474, %v524
    %v541 = vsub.f32 %v513, %v524
    %v542 = vsub.f32 %v515, %v524
    %v543 = vmul.f32 %v538, %v92
    %545 = vset.pattern.permute.xlu0 0
    %546 = vperm.xlu0 %545, %v543
    %v547 = vpop.permute.xlu0 %546
    %v549 = vmul.f32 %v539, %v547
    %v550 = vmul.f32 %v540, %v547
    %v551 = vmul.f32 %v541, %v547
    %v552 = vmul.f32 %v542, %v547
    %554 = vset.pattern.permute.xlu0 1
    %555 = vperm.xlu0 %554, %v92
    %v556 = vpop.permute.xlu0 %555
    %v558 = vadd.f32 %v549, %v556
    %v559 = vadd.f32 %v550, %v556
    %v560 = vadd.f32 %v551, %v556
    %v561 = vadd.f32 %v552, %v556
    %v562 = vmax.f32 %v558, 0.0
    %v563 = vmax.f32 %v559, 0.0
    %v564 = vmax.f32 %v560, 0.0
    %v565 = vmax.f32 %v561, 0.0
    %v566 = vld [vmem:[%s3] sm:$0xf]
    %567 = vrot.lane.b32.xlu0 %v562, 17
    %v568 = vpop.permute.xlu0 %567
    %569 = vrot.lane.b32.xlu0 %v563, 17
    %v570 = vpop.permute.xlu0 %569
    %571 = vrot.lane.b32.xlu0 %v564, 17
    %v572 = vpop.permute.xlu0 %571
    %573 = vrot.lane.b32.xlu0 %v565, 17
    %v574 = vpop.permute.xlu0 %573
    %v575 = vsel %vm104, %v572, %v574
    %v576 = vsel %vm104, %v570, %v572
    %v577 = vsel %vm104, %v568, %v570
    %v578 = vsel %vm104, %v574, %v568
    %v579 = vmul.f32 %v578, %v113
    %v580 = vmul.f32 %v577, %v117
    %v581 = vmul.f32 %v576, %v121
    %v582 = vmul.f32 %v575, %v125
    %583 = vrot.lane.b32.xlu0 %v562, 16
    %v584 = vpop.permute.xlu0 %583
    %585 = vrot.lane.b32.xlu0 %v563, 16
    %v586 = vpop.permute.xlu0 %585
    %587 = vrot.lane.b32.xlu0 %v564, 16
    %v588 = vpop.permute.xlu0 %587
    %589 = vrot.lane.b32.xlu0 %v565, 16
    %v590 = vpop.permute.xlu0 %589
    %v591 = vsel %vm142, %v588, %v590
    %v592 = vsel %vm142, %v586, %v588
    %v593 = vsel %vm142, %v584, %v586
    %v594 = vsel %vm142, %v590, %v584
    %v595 = vmul.f32 %v594, %v151
    %v596 = vmul.f32 %v593, %v155
    %v597 = vmul.f32 %v592, %v159
    %v598 = vmul.f32 %v591, %v163
    %599 = vrot.lane.b32.xlu0 %v562, 15
    %v600 = vpop.permute.xlu0 %599
    %601 = vrot.lane.b32.xlu0 %v563, 15
    %v602 = vpop.permute.xlu0 %601
    %603 = vrot.lane.b32.xlu0 %v564, 15
    %v604 = vpop.permute.xlu0 %603
    %605 = vrot.lane.b32.xlu0 %v565, 15
    %v606 = vpop.permute.xlu0 %605
    %v607 = vsel %vm180, %v604, %v606
    %v608 = vsel %vm180, %v602, %v604
    %v609 = vsel %vm180, %v600, %v602
    %v610 = vsel %vm180, %v606, %v600
    %v611 = vmul.f32 %v610, %v189
    %v612 = vmul.f32 %v609, %v193
    %v613 = vmul.f32 %v608, %v197
    %v614 = vmul.f32 %v607, %v201
    %615 = vrot.lane.b32.xlu0 %v562, 1
    %v616 = vpop.permute.xlu0 %615
    %617 = vrot.lane.b32.xlu0 %v563, 1
    %v618 = vpop.permute.xlu0 %617
    %619 = vrot.lane.b32.xlu0 %v564, 1
    %v620 = vpop.permute.xlu0 %619
    %621 = vrot.lane.b32.xlu0 %v565, 1
    %v622 = vpop.permute.xlu0 %621
    %v623 = vsel %vm218, %v620, %v622
    %v624 = vsel %vm218, %v618, %v620
    %v625 = vsel %vm218, %v616, %v618
    %v626 = vsel %vm218, %v622, %v616
    %v627 = vmul.f32 %v626, %v227
    %v628 = vmul.f32 %v625, %v231
    %v629 = vmul.f32 %v624, %v235
    %v630 = vmul.f32 %v623, %v239
    %631 = vrot.lane.b32.xlu0 %v562, 127
    %v632 = vpop.permute.xlu0 %631
    %633 = vrot.lane.b32.xlu0 %v563, 127
    %v634 = vpop.permute.xlu0 %633
    %635 = vrot.lane.b32.xlu0 %v564, 127
    %v636 = vpop.permute.xlu0 %635
    %637 = vrot.lane.b32.xlu0 %v565, 127
    %v638 = vpop.permute.xlu0 %637
    %v639 = vsel %vm256, %v636, %v638
    %v640 = vsel %vm256, %v634, %v636
    %v641 = vsel %vm256, %v632, %v634
    %v642 = vsel %vm256, %v638, %v632
    %v643 = vmul.f32 %v641, %v265
    %v644 = vmul.f32 %v640, %v269
    %v645 = vmul.f32 %v639, %v273
    %v646 = vmul.f32 %v642, %v277
    %647 = vrot.lane.b32.xlu0 %v562, 113
    %v648 = vpop.permute.xlu0 %647
    %649 = vrot.lane.b32.xlu0 %v563, 113
    %v650 = vpop.permute.xlu0 %649
    %651 = vrot.lane.b32.xlu0 %v564, 113
    %v652 = vpop.permute.xlu0 %651
    %653 = vrot.lane.b32.xlu0 %v565, 113
    %v654 = vpop.permute.xlu0 %653
    %v655 = vsel %vm294, %v652, %v654
    %v656 = vsel %vm294, %v650, %v652
    %v657 = vsel %vm294, %v648, %v650
    %v658 = vsel %vm294, %v654, %v648
    %v659 = vmul.f32 %v657, %v303
    %v660 = vmul.f32 %v656, %v307
    %v661 = vmul.f32 %v655, %v311
    %v662 = vmul.f32 %v658, %v315
    %663 = vrot.lane.b32.xlu0 %v562, 112
    %v664 = vpop.permute.xlu0 %663
    %665 = vrot.lane.b32.xlu0 %v563, 112
    %v666 = vpop.permute.xlu0 %665
    %667 = vrot.lane.b32.xlu0 %v564, 112
    %v668 = vpop.permute.xlu0 %667
    %669 = vrot.lane.b32.xlu0 %v565, 112
    %v670 = vpop.permute.xlu0 %669
    %v671 = vsel %vm332, %v668, %v670
    %v672 = vsel %vm332, %v666, %v668
    %v673 = vsel %vm332, %v664, %v666
    %v674 = vsel %vm332, %v670, %v664
    %v675 = vmul.f32 %v673, %v341
    %v676 = vmul.f32 %v672, %v345
    %v677 = vmul.f32 %v671, %v349
    %v678 = vmul.f32 %v674, %v353
    %679 = vrot.lane.b32.xlu0 %v562, 111
    %v680 = vpop.permute.xlu0 %679
    %681 = vrot.lane.b32.xlu0 %v563, 111
    %v682 = vpop.permute.xlu0 %681
    %683 = vrot.lane.b32.xlu0 %v564, 111
    %v684 = vpop.permute.xlu0 %683
    %685 = vrot.lane.b32.xlu0 %v565, 111
    %v686 = vpop.permute.xlu0 %685
    %v687 = vsel %vm370, %v684, %v686
    %v688 = vsel %vm370, %v682, %v684
    %v689 = vsel %vm370, %v680, %v682
    %v690 = vsel %vm370, %v686, %v680
    %v691 = vmul.f32 %v689, %v379
    %v692 = vmul.f32 %v688, %v383
    %v693 = vmul.f32 %v687, %v387
    %v694 = vmul.f32 %v690, %v391
    %v695 = vpack.c.bf16 %v595, %v579
    %v696 = vpack.c.bf16 %v596, %v580
    %v697 = vpack.c.bf16 %v597, %v581
    %v698 = vpack.c.bf16 %v598, %v582
    %v699 = vpack.c.bf16 %v627, %v611
    %v700 = vpack.c.bf16 %v628, %v612
    %v701 = vpack.c.bf16 %v629, %v613
    %v702 = vpack.c.bf16 %v630, %v614
    %v703 = vpack.c.bf16 %v643, %v562
    %v704 = vpack.c.bf16 %v644, %v563
    %v705 = vpack.c.bf16 %v645, %v564
    %v706 = vpack.c.bf16 %v646, %v565
    %v707 = vpack.c.bf16 %v675, %v659
    %v708 = vpack.c.bf16 %v676, %v660
    %v709 = vpack.c.bf16 %v677, %v661
    %v710 = vpack.c.bf16 %v678, %v662
    %v711 = vpack.c.bf16 %v691, %v691
    %v712 = vpack.c.bf16 %v692, %v692
    %v713 = vpack.c.bf16 %v693, %v693
    %v714 = vpack.c.bf16 %v694, %v694
    %v716 = vsel %vm420, %v566, 0
    %v719 = vsel %vm424, %v711, 0
    %v722 = vsel %vm424, %v712, 0
    %v725 = vsel %vm424, %v713, 0
    %v728 = vsel %vm424, %v714, 0
    %730 = vmatprep.subr.bf16.mxu0 %v696
    %731 = vmatpush1.bf16.msra.mxu0 %v695
    %732 = vmatprep.subr.bf16.mxu0 %v700
    %733 = vmatpush1.bf16.msra.mxu0 %v699
    %734 = vmatprep.subr.bf16.mxu0 %v704
    %735 = vmatpush1.bf16.msra.mxu0 %v703
    %736 = vmatprep.subr.bf16.mxu0 %v708
    %737 = vmatpush1.bf16.msra.mxu0 %v707
    %738 = vmatprep.subr.bf16.mxu0 %v722
    %739 = vmatpush1.bf16.msra.mxu0 %v719
    %740 = vmatprep.subr.bf16.mxu0 0
    %741 = vmatpush1.bf16.msra.mxu0 0
    %742 = vmatprep.subr.bf16.mxu0 0
    %743 = vmatpush1.bf16.msra.mxu0 0
    %744 = vmatprep.subr.bf16.mxu0 0
    %745 = vmatpush1.bf16.msra.mxu0 0
    %746 = vmatprep.subr.bf16.mxu0 0
    %747 = vmatpush1.bf16.msra.mxu0 0
    %748 = vmatprep.subr.bf16.mxu0 0
    %749 = vmatpush1.bf16.msra.mxu0 0
    %750 = vmatprep.subr.bf16.mxu0 0
    %751 = vmatpush1.bf16.msra.mxu0 0
    %752 = vmatprep.subr.bf16.mxu0 0
    %753 = vmatpush1.bf16.msra.mxu0 0
    %754 = vmatprep.subr.bf16.mxu0 0
    %755 = vmatpush1.bf16.msra.mxu0 0
    %756 = vmatprep.subr.bf16.mxu0 0
    %757 = vmatpush1.bf16.msra.mxu0 0
    %758 = vmatprep.subr.bf16.mxu0 0
    %759 = vmatpush1.bf16.msra.mxu0 0
    %760 = vmatprep.subr.bf16.mxu0 0
    %761 = vmatpush1.bf16.msra.mxu0 0
    %762 = vmatprep.mubr.bf16.mxu0 0
    %763 = vmatmul.mubr.bf16.gmra.mrb[0].mxu0 %v716
    %v764 = vpop.f32.mrb[0].mxu0
    %v765 = vadd.f32 0.0, %v764
    %v766 = vpop.f32.mrb[0].mxu0
    %v767 = vadd.f32 0.0, %v766
    %v768 = vpop.f32.mrb[0].mxu0
    %v769 = vpop.f32.mrb[0].mxu0
    %770 = vdwg.mxu0
    %771 = vmatprep.subr.bf16.mxu0 %v698
    %772 = vmatpush1.bf16.msra.mxu0 %v697
    %773 = vmatprep.subr.bf16.mxu0 %v702
    %774 = vmatpush1.bf16.msra.mxu0 %v701
    %775 = vmatprep.subr.bf16.mxu0 %v706
    %776 = vmatpush1.bf16.msra.mxu0 %v705
    %777 = vmatprep.subr.bf16.mxu0 %v710
    %778 = vmatpush1.bf16.msra.mxu0 %v709
    %779 = vmatprep.subr.bf16.mxu0 %v728
    %780 = vmatpush1.bf16.msra.mxu0 %v725
    %781 = vmatprep.subr.bf16.mxu0 0
    %782 = vmatpush1.bf16.msra.mxu0 0
    %783 = vmatprep.subr.bf16.mxu0 0
    %784 = vmatpush1.bf16.msra.mxu0 0
    %785 = vmatprep.subr.bf16.mxu0 0
    %786 = vmatpush1.bf16.msra.mxu0 0
    %787 = vmatprep.subr.bf16.mxu0 0
    %788 = vmatpush1.bf16.msra.mxu0 0
    %789 = vmatprep.subr.bf16.mxu0 0
    %790 = vmatpush1.bf16.msra.mxu0 0
    %791 = vmatprep.subr.bf16.mxu0 0
    %792 = vmatpush1.bf16.msra.mxu0 0
    %793 = vmatprep.subr.bf16.mxu0 0
    %794 = vmatpush1.bf16.msra.mxu0 0
    %795 = vmatprep.subr.bf16.mxu0 0
    %796 = vmatpush1.bf16.msra.mxu0 0
    %797 = vmatprep.subr.bf16.mxu0 0
    %798 = vmatpush1.bf16.msra.mxu0 0
    %799 = vmatprep.subr.bf16.mxu0 0
    %800 = vmatpush1.bf16.msra.mxu0 0
    %801 = vmatprep.subr.bf16.mxu0 0
    %802 = vmatpush1.bf16.msra.mxu0 0
    %803 = vmatprep.mubr.bf16.mxu0 0
    %804 = vmatmul.mubr.bf16.gmra.mrb[0].mxu0 %v716
    %v805 = vpop.f32.mrb[0].mxu0
    %v806 = vadd.f32 0.0, %v805
    %v807 = vpop.f32.mrb[0].mxu0
    %v808 = vadd.f32 0.0, %v807
    %v809 = vpop.f32.mrb[0].mxu0
    %v810 = vpop.f32.mrb[0].mxu0
    %811 = vdwg.mxu0
    %v812 = vadd.f32 %v765, %v767
    %v813 = vadd.f32 %v812, %v806
    %v814 = vadd.f32 %v813, %v808
    %815 = vadd.xlane.f32.xlu0 %v814
    %v816 = vpop.xlane.xlu0 %815
    %v817 = vmul.f32 %v816, 0.001953125
    %v818 = vmul.f32 %v765, %v765
    %v819 = vmul.f32 %v767, %v767
    %v820 = vmul.f32 %v806, %v806
    %v821 = vmul.f32 %v808, %v808
    %v822 = vadd.f32 %v818, %v819
    %v823 = vadd.f32 %v822, %v820
    %v824 = vadd.f32 %v823, %v821
    %825 = vadd.xlane.f32.xlu0 %v824
    %v826 = vpop.xlane.xlu0 %825
    %v827 = vmul.f32 %v826, 0.001953125
    %v828 = vmul.f32 %v817, %v817
    %v829 = vsub.f32 %v827, %v828
    %v830 = vadd.f32 %v829, 1e-05
    %v831 = vrsqrt.pop %v830
    %v832 = vsub.f32 %v765, %v817
    %v833 = vsub.f32 %v767, %v817
    %v834 = vsub.f32 %v806, %v817
    %v835 = vsub.f32 %v808, %v817
    %v836 = vmul.f32 %v831, %v92
    %838 = vset.pattern.permute.xlu0 2
    %839 = vperm.xlu0 %838, %v836
    %v840 = vpop.permute.xlu0 %839
    %v842 = vmul.f32 %v832, %v840
    %v843 = vmul.f32 %v833, %v840
    %v844 = vmul.f32 %v834, %v840
    %v845 = vmul.f32 %v835, %v840
    %846 = vset.pattern.permute.xlu0 3
    %847 = vperm.xlu0 %846, %v92
    %v848 = vpop.permute.xlu0 %847
    %v850 = vadd.f32 %v842, %v848
    %v851 = vadd.f32 %v843, %v848
    %v852 = vadd.f32 %v844, %v848
    %v853 = vadd.f32 %v845, %v848
    %v854 = vadd.f32 %v850, %v34
    %v855 = vadd.f32 %v851, %v35
    %v856 = vadd.f32 %v852, %v36
    %v857 = vadd.f32 %v853, %v37
    %858 = vst [vmem:[#allocation5] sm:$0xff] %v854
    %859 = vst [vmem:[#allocation5 + $0x8] sm:$0xff] %v855
    %860 = vst [vmem:[#allocation5 + $0x10] sm:$0xff] %v856
    %861 = vst [vmem:[#allocation5 + $0x18] sm:$0xff] %v857
    // Predicated region
    $region26: #{tpu_custom_call.1} parent=1 // pred_check
      _
    $region27: #{tpu_custom_call.1} parent=1 // pred_check_branch
      %863 = sbr.rel (0) target = $region29
    $region28: #{tpu_custom_call.1} parent=1 // pred_region
      %s865 = ssub.s32 512, 512
      %866 = vsyncadd [#allocation4], %s865
      %s868 = sshll.u32 [#allocation5], 4
      %s869 = int_to_ptr.vmem [resolvable:$true] %s868
      %871 = dma.vmem_to_hbm [thread:$0]  %s869, 512, %s5, [#allocation4]
    $region29: #{tpu_custom_call.1} parent=1 // pred_fallthru
      _
    // Predicated region
    $region30: #{tpu_custom_call.1} parent=1 // pred_check
      _
    $region31: #{tpu_custom_call.1} parent=1 // pred_check_branch
      %873 = sbr.rel (0) target = $region33
    $region32: #{tpu_custom_call.1} parent=1 // pred_region
      %874 = dma.done [#allocation4], 512
    $region33: #{tpu_custom_call.1} parent=1 // pred_fallthru
      _
    %875 = vsyncpa [#allocation3], 1
    %876 = vsyncpa [#allocation4], 1

</llo_original>
